<compile_context>
chip_gen: v5e
topology: v5e:2x2
jax: 0.10.0
libtpu: 0.0.40
codegen_flags: <defaults>
</compile_context>

<pallas_src>
import jax
import jax.numpy as jnp
from jax import lax
from jax.experimental import pallas as pl
from jax.experimental.pallas import tpu as pltpu


def _round_up(x, m):
    return (x + m - 1) // m * m


# ---------------------------------------------------------------------------
# Fast path: token-blocked kernel, VMEM-resident table, one-hot MXU gather.
# ---------------------------------------------------------------------------
def _bigram_block_kernel(idx_ref, tgt_ref, table_ref, logits_ref, nll_ref):
    # idx_ref, tgt_ref : (TB, 1) int32 token / target ids for this block
    # table_ref        : (V, V)  f32 embedding table (fetched once, resident)
    # logits_ref       : (TB, V) f32 logits block
    # nll_ref          : (TB, 1) f32 per-token NLL partials
    tb, v = logits_ref.shape
    cols = lax.broadcasted_iota(jnp.int32, (tb, v), 1)

    # Gather TB table rows with a one-hot matmul -> MXU, no per-row DMAs.
    onehot = (cols == idx_ref[...]).astype(jnp.float32)                # (TB, V)
    logits = jnp.dot(onehot, table_ref[...],
                     preferred_element_type=jnp.float32)               # (TB, V)
    logits_ref[...] = logits

    # Max-shifted cross-entropy, vectorized over the whole token block:
    # nll = (lse + max) - (tgt + max) = lse_shifted - tgt_shifted
    row_max = jnp.max(logits, axis=-1, keepdims=True)                  # (TB, 1)
    shifted = logits - row_max                                         # (TB, V)
    lse = jnp.log(jnp.sum(jnp.exp(shifted), axis=-1, keepdims=True))   # (TB, 1)
    tgt_shifted = jnp.sum(jnp.where(cols == tgt_ref[...], shifted, 0.0),
                          axis=-1, keepdims=True)                      # (TB, 1)
    nll_ref[...] = lse - tgt_shifted


def _forward_blocked(idx_flat, tgt_flat, table, block_tokens):
    n = idx_flat.shape[0]
    v = table.shape[0]
    tb = _round_up(min(block_tokens, n), 8)
    n_pad = _round_up(n, tb)
    pad = n_pad - n
    # Padded ids are 0 (valid table row); their loss rows are sliced off below.
    idx_p = jnp.pad(idx_flat, (0, pad)).reshape(n_pad, 1)
    tgt_p = jnp.pad(tgt_flat, (0, pad)).reshape(n_pad, 1)

    logits_p, nll_p = pl.pallas_call(
        _bigram_block_kernel,
        grid_spec=pltpu.PrefetchScalarGridSpec(
            num_scalar_prefetch=0,
            grid=(n_pad // tb,),
            in_specs=[
                pl.BlockSpec((tb, 1), lambda i: (i, 0)),
                pl.BlockSpec((tb, 1), lambda i: (i, 0)),
                # Constant index_map: table DMA'd once, resident across blocks.
                pl.BlockSpec((v, v), lambda i: (0, 0)),
            ],
            out_specs=(
                pl.BlockSpec((tb, v), lambda i: (i, 0)),
                pl.BlockSpec((tb, 1), lambda i: (i, 0)),
            ),
        ),
        out_shape=(
            jax.ShapeDtypeStruct((n_pad, v), jnp.float32),
            jax.ShapeDtypeStruct((n_pad, 1), jnp.float32),
        ),
        compiler_params=pltpu.CompilerParams(
            dimension_semantics=("parallel",),
            vmem_limit_bytes=64 * 1024 * 1024,
        ),
    )(idx_p, tgt_p, table)
    return logits_p[:n], nll_p[:n, 0]


# ---------------------------------------------------------------------------
# Fallback path: per-token DMA row gather (huge vocab; table stays in HBM).
# ---------------------------------------------------------------------------
def _bigram_row_kernel(idx_ref, tgt_ref, row_ref, logits_ref, nll_ref):
    # idx_ref, tgt_ref : (N,) int32 scalar-prefetch arrays (SMEM)
    # row_ref          : (1, 1, V) f32 -- table row gathered for token i
    # logits_ref       : (1, 1, V) f32 logits row i
    # nll_ref          : (1, 1, 1) f32 per-token NLL partial
    i = pl.program_id(0)

    row = row_ref[...]                                                 # (1,1,V)
    logits_ref[...] = row

    v = row.shape[-1]
    logits2d = row[0]                                                  # (1, V)
    cols = lax.broadcasted_iota(jnp.int32, (1, v), 1)

    row_max = jnp.max(logits2d, axis=-1, keepdims=True)                # (1, 1)
    shifted = logits2d - row_max                                       # (1, V)
    lse = jnp.log(jnp.sum(jnp.exp(shifted), axis=-1, keepdims=True))   # (1, 1)
    tgt = tgt_ref[i]
    tgt_shifted = jnp.sum(jnp.where(cols == tgt, shifted, 0.0),
                          axis=-1, keepdims=True)                      # (1, 1)
    nll_ref[0] = lse - tgt_shifted


def _forward_row_gather(idx_flat, tgt_flat, table):
    n = idx_flat.shape[0]
    v = table.shape[0]
    # (V, 1, V) view so the block's minor two dims equal the array's minor dims.
    table3 = table.reshape(v, 1, v)

    logits3, nll = pl.pallas_call(
        _bigram_row_kernel,
        grid_spec=pltpu.PrefetchScalarGridSpec(
            num_scalar_prefetch=2,
            grid=(n,),
            in_specs=[
                pl.BlockSpec((1, 1, v), lambda i, idx, tgt: (idx[i], 0, 0)),
            ],
            out_specs=(
                pl.BlockSpec((1, 1, v), lambda i, idx, tgt: (i, 0, 0)),
                pl.BlockSpec((1, 1, 1), lambda i, idx, tgt: (i, 0, 0)),
            ),
        ),
        out_shape=(
            jax.ShapeDtypeStruct((n, 1, v), jnp.float32),
            jax.ShapeDtypeStruct((n, 1, 1), jnp.float32),
        ),
        compiler_params=pltpu.CompilerParams(
            dimension_semantics=("parallel",),
            vmem_limit_bytes=32 * 1024 * 1024,
        ),
    )(idx_flat, tgt_flat, table3)
    return logits3.reshape(n, v), nll.reshape(n)


# ---------------------------------------------------------------------------
# Public wrapper (matches BigramLanguageModel.forward semantics).
# ---------------------------------------------------------------------------
def bigram_forward(idx, targets, table, *, block_tokens=256,
                   max_vmem_table_bytes=16 * 1024 * 1024):
    """Pallas equivalent of BigramLanguageModel.forward(idx, targets)."""
    b, t = idx.shape
    v = table.shape[0]
    n = b * t

    idx_flat = idx.reshape(n).astype(jnp.int32)
    if targets is None:
        tgt_flat = jnp.zeros((n,), jnp.int32)   # dummy; loss is discarded
    else:
        tgt_flat = targets.reshape(n).astype(jnp.int32)
    table_f32 = table.astype(jnp.float32)

    if v * v * 4 <= max_vmem_table_bytes:
        logits_flat, nll = _forward_blocked(idx_flat, tgt_flat, table_f32,
                                            block_tokens)
    else:
        logits_flat, nll = _forward_row_gather(idx_flat, tgt_flat, table_f32)

    logits = logits_flat.reshape(b, t, v)
    if targets is None:
        return logits, None
    # Mean over all B*T tokens (F.cross_entropy default reduction).
    loss = jnp.sum(nll) / n
    return logits, loss


def bigram_forward_ref(idx, targets, table):
    """Pure-JAX reference for correctness checking."""
    logits = table[idx]  # (B, T, V)
    b, t, v = logits.shape
    lf = logits.reshape(b * t, v)
    tf = targets.reshape(-1)
    lse = jax.nn.logsumexp(lf, axis=-1)
    tgt_logit = jnp.take_along_axis(lf, tf[:, None], axis=-1)[:, 0]
    loss = jnp.mean(lse - tgt_logit)
    return logits, loss


if __name__ == "__main__":
    key = jax.random.PRNGKey(0)
    k_table, k_idx, k_tgt = jax.random.split(key, 3)

    VOCAB = 128      # lane dim of 128 -> clean TPU layout
    B, T = 2, 8

    # nn.Embedding(vocab, vocab) init: standard-normal weights.
    table = jax.random.normal(k_table, (VOCAB, VOCAB), dtype=jnp.float32)
    idx = jax.random.randint(k_idx, (B, T), 0, VOCAB, dtype=jnp.int32)
    targets = jax.random.randint(k_tgt, (B, T), 0, VOCAB, dtype=jnp.int32)

    logits_ref, loss_ref = bigram_forward_ref(idx, targets, table)

    # 1) Fast path, single token block.
    logits, loss = bigram_forward(idx, targets, table)
    logits = jax.block_until_ready(logits)
    loss = jax.block_until_ready(loss)
    assert logits.shape == (B, T, VOCAB)
    assert jnp.allclose(logits, logits_ref, atol=1e-5), "logits mismatch (blocked)"
    assert jnp.allclose(loss, loss_ref, atol=1e-5), "loss mismatch (blocked)"

    # 2) Fast path, multiple token blocks (exercises the pipelined grid).
    logits_mb, loss_mb = bigram_forward(idx, targets, table, block_tokens=8)
    jax.block_until_ready(loss_mb)
    assert jnp.allclose(logits_mb, logits_ref, atol=1e-5), "logits mismatch (multi-block)"
    assert jnp.allclose(loss_mb, loss_ref, atol=1e-5), "loss mismatch (multi-block)"

    # 3) Fallback per-token DMA row-gather path (forced).
    logits_rg, loss_rg = bigram_forward(idx, targets, table,
                                        max_vmem_table_bytes=0)
    jax.block_until_ready(loss_rg)
    assert jnp.allclose(logits_rg, logits_ref, atol=1e-5), "logits mismatch (row-gather)"
    assert jnp.allclose(loss_rg, loss_ref, atol=1e-5), "loss mismatch (row-gather)"

    # 4) targets=None branch (loss is None, logits only).
    logits_nt, loss_nt = bigram_forward(idx, None, table)
    jax.block_until_ready(logits_nt)
    assert loss_nt is None
    assert jnp.allclose(logits_nt, logits_ref, atol=1e-5), "logits mismatch (no targets)"

    # TODO(synk): generate() (autoregressive multinomial sampling) is a
    # host-side Python loop in the reference module and is not a kernel.

    print("KERNEL_OK")
</pallas_src>

<mosaic_0001>
module attributes {stable_mosaic.version = 11 : i64} {
  func.func @_bigram_block_kernel(%arg0: i32, %arg1: memref<16x1xi32, #tpu.memory_space<vmem>>, %arg2: memref<16x1xi32, #tpu.memory_space<vmem>>, %arg3: memref<128x128xf32, #tpu.memory_space<vmem>>, %arg4: memref<16x128xf32, #tpu.memory_space<vmem>>, %arg5: memref<16x1xf32, #tpu.memory_space<vmem>>) attributes {dimension_semantics = [#tpu.dimension_semantics<parallel>], iteration_bounds = array<i64: 1>, scalar_prefetch = 0 : i64, scratch_operands = 0 : i64, tpu.core_type = #tpu.core_type<tc>, window_params = [{transform_indices = @transform_0, window_bounds = array<i64: 16, 1>}, {transform_indices = @transform_1, window_bounds = array<i64: 16, 1>}, {pipeline_mode = #tpu.pipeline_mode<synchronous>, transform_indices = @transform_2, window_bounds = array<i64: 128, 128>}, {transform_indices = @transform_3, window_bounds = array<i64: 16, 128>}, {transform_indices = @transform_4, window_bounds = array<i64: 16, 1>}]} {
    %0 = tpu.iota {dimensions = array<i32: 1>} : vector<16x128xi32>
    %c0 = arith.constant 0 : index
    %c0_0 = arith.constant 0 : index
    %1 = vector.load %arg1[%c0, %c0_0] : memref<16x1xi32, #tpu.memory_space<vmem>>, vector<16x1xi32>
    %2 = vector.broadcast %1 : vector<16x1xi32> to vector<16x128xi32>
    %3 = arith.cmpi eq, %0, %2 : vector<16x128xi32>
    %4 = arith.extui %3 : vector<16x128xi1> to vector<16x128xi32>
    %5 = arith.sitofp %4 : vector<16x128xi32> to vector<16x128xf32>
    %c0_1 = arith.constant 0 : index
    %c0_2 = arith.constant 0 : index
    %6 = vector.load %arg3[%c0_1, %c0_2] : memref<128x128xf32, #tpu.memory_space<vmem>>, vector<128x128xf32>
    %cst = arith.constant dense<0.000000e+00> : vector<16x128xf32>
    %7 = tpu.matmul %5, %6, %cst {dimension_numbers = #tpu.dot_dimension_numbers<[1], [0], [0], [1], [0, 0, 1, 1], [], []>} : vector<16x128xf32>, vector<128x128xf32>, vector<16x128xf32> -> vector<16x128xf32>
    %c0_3 = arith.constant 0 : index
    %c0_4 = arith.constant 0 : index
    %8 = vector.load %arg4[%c0_3, %c0_4] : memref<16x128xf32, #tpu.memory_space<vmem>>, vector<16x128xf32>
    tpu.vector_store %arg4[%c0_3, %c0_4], %7 {strides = array<i32>} : memref<16x128xf32, #tpu.memory_space<vmem>>, vector<16x128xf32>,
    %cst_5 = arith.constant dense<0xFF800000> : vector<16xf32>
    %9 = vector.multi_reduction <maximumf>, %7, %cst_5 [1] : vector<16x128xf32> to vector<16xf32>
    %10 = vector.shape_cast %9 : vector<16xf32> to vector<16x1xf32>
    %11 = vector.broadcast %10 : vector<16x1xf32> to vector<16x128xf32>
    %12 = arith.subf %7, %11 : vector<16x128xf32>
    %13 = math.exp %12 : vector<16x128xf32>
    %cst_6 = arith.constant dense<0.000000e+00> : vector<16xf32>
    %14 = vector.multi_reduction <add>, %13, %cst_6 [1] : vector<16x128xf32> to vector<16xf32>
    %15 = vector.shape_cast %14 : vector<16xf32> to vector<16x1xf32>
    %16 = math.log %15 : vector<16x1xf32>
    %c0_7 = arith.constant 0 : index
    %c0_8 = arith.constant 0 : index
    %17 = vector.load %arg2[%c0_7, %c0_8] : memref<16x1xi32, #tpu.memory_space<vmem>>, vector<16x1xi32>
    %18 = vector.broadcast %17 : vector<16x1xi32> to vector<16x128xi32>
    %19 = arith.cmpi eq, %0, %18 : vector<16x128xi32>
    %cst_9 = arith.constant 0.000000e+00 : f32
    %20 = vector.broadcast %cst_9 : f32 to vector<16x128xf32>
    %21 = arith.select %19, %12, %20 : vector<16x128xi1>, vector<16x128xf32>
    %cst_10 = arith.constant dense<0.000000e+00> : vector<16xf32>
    %22 = vector.multi_reduction <add>, %21, %cst_10 [1] : vector<16x128xf32> to vector<16xf32>
    %23 = vector.shape_cast %22 : vector<16xf32> to vector<16x1xf32>
    %24 = arith.subf %16, %23 : vector<16x1xf32>
    %c0_11 = arith.constant 0 : index
    %c0_12 = arith.constant 0 : index
    %25 = vector.load %arg5[%c0_11, %c0_12] : memref<16x1xf32, #tpu.memory_space<vmem>>, vector<16x1xf32>
    tpu.vector_store %arg5[%c0_11, %c0_12], %24 {strides = array<i32>} : memref<16x1xf32, #tpu.memory_space<vmem>>, vector<16x1xf32>,
    return
  }
  func.func @transform_0(%arg0: i32) -> (i32, i32) {
    %c0_i32 = arith.constant 0 : i32
    %c0_i32_0 = arith.constant 0 : i32
    return %arg0, %c0_i32 : i32, i32
  }
  func.func @transform_1(%arg0: i32) -> (i32, i32) {
    %c0_i32 = arith.constant 0 : i32
    %c0_i32_0 = arith.constant 0 : i32
    return %arg0, %c0_i32 : i32, i32
  }
  func.func @transform_2(%arg0: i32) -> (i32, i32) {
    %c0_i32 = arith.constant 0 : i32
    %c0_i32_0 = arith.constant 0 : i32
    %c0_i32_1 = arith.constant 0 : i32
    return %c0_i32, %c0_i32_0 : i32, i32
  }
  func.func @transform_3(%arg0: i32) -> (i32, i32) {
    %c0_i32 = arith.constant 0 : i32
    %c0_i32_0 = arith.constant 0 : i32
    return %arg0, %c0_i32 : i32, i32
  }
  func.func @transform_4(%arg0: i32) -> (i32, i32) {
    %c0_i32 = arith.constant 0 : i32
    %c0_i32_0 = arith.constant 0 : i32
    return %arg0, %c0_i32 : i32, i32
  }
}

</mosaic_0001>

<llo_original>
// kernel: tpu_custom_call.1
$region0: #{tpu_custom_call.1}
  #allocation0 [shape = 'u32[]', space=smem, size = 0x4, offset = 0x4, fixed_abs, tag = 'smem constant byte address 0x4 - core index']
  #allocation1 [shape = 'u32[72,128]{1,0:T(1,128)}', space=vmem, size = 0x9000, scoped, tag = 'internal scratch']
  %s0 = inlined_call_operand.vmem [shape: s32[16,1], index: 0, kind: input, shape index: {}]
  %s1 = inlined_call_operand.vmem [shape: s32[16,1], index: 1, kind: input, shape index: {}]
  %s2 = inlined_call_operand.hbm [shape: f32[128,128], index: 2, kind: input, shape index: {}]
  %s3 = inlined_call_operand.hbm [shape: f32[16,128], index: 3, kind: output, shape index: {0}]
  %s4 = inlined_call_operand.vmem [shape: f32[16,1], index: 4, kind: output, shape index: {1}]
  %5 = xla_tuple %s3, %s4
  %s6 = sld [smem:[#allocation0]]
  $region34: #{tpu_custom_call.1} parent=0
    _
  %s8 = ssub.s32 1, %s6
  %s9 = scalar_select 0, %s8, %s6
  $region1: #{tpu_custom_call.1} parent=0
    #allocation2 [shape = 'u8[65536]{0}', space=vmem, size = 0x10000, scoped, tag = 'input window, operand 2, single buffered']
    #allocation3 [shape = 's32[1]{0}', space=sflag, size = 0x4, scoped, tag = 'scoped memory for tpu_custom_call.1']
    #allocation4 [shape = 's32[1]{0}', space=sflag, size = 0x4, scoped, tag = 'scoped memory for tpu_custom_call.1']
    #allocation5 [shape = 'u8[8192]{0}', space=vmem, size = 0x2000, scoped, tag = 'output window, operand 0, single buffered']
    %10 = vsyncpa [#allocation3], 0
    %11 = vsyncpa [#allocation4], 0
    // Predicated region
    $region2: #{tpu_custom_call.1} parent=1 // pred_check
      _
    $region3: #{tpu_custom_call.1} parent=1 // pred_check_branch
      %13 = sbr.rel (0) target = $region5
    $region4: #{tpu_custom_call.1} parent=1 // pred_region
      _
    $region5: #{tpu_custom_call.1} parent=1 // pred_fallthru
      _
    // Predicated region
    $region6: #{tpu_custom_call.1} parent=1 // pred_check
      _
    $region7: #{tpu_custom_call.1} parent=1 // pred_check_branch
      %15 = sbr.rel (0) target = $region9
    $region8: #{tpu_custom_call.1} parent=1 // pred_region
      _
    $region9: #{tpu_custom_call.1} parent=1 // pred_fallthru
      _
    // Predicated region
    $region10: #{tpu_custom_call.1} parent=1 // pred_check
      _
    $region11: #{tpu_custom_call.1} parent=1 // pred_check_branch
      %17 = sbr.rel (0) target = $region13
    $region12: #{tpu_custom_call.1} parent=1 // pred_region
      %19 = vsyncadd [#allocation3], 0
      %s20 = sshll.u32 %s2, 4
      %s21 = int_to_ptr.hbm [resolvable:$true] %s20
      %s22 = sshll.u32 [#allocation2], 4
      %s23 = int_to_ptr.vmem [resolvable:$true] %s22
      %28 = dma.hbm_to_vmem [thread:$0]  %s21, 2048, %s23, [#allocation3], 128, 128, 8
    $region13: #{tpu_custom_call.1} parent=1 // pred_fallthru
      _
    // Predicated region
    $region14: #{tpu_custom_call.1} parent=1 // pred_check
      _
    $region15: #{tpu_custom_call.1} parent=1 // pred_check_branch
      %30 = sbr.rel (0) target = $region17
    $region16: #{tpu_custom_call.1} parent=1 // pred_region
      %32 = dma.done [#allocation3], 2048
    $region17: #{tpu_custom_call.1} parent=1 // pred_fallthru
      _
    %v33 = vlaneseq
    %v34 = vand.u32 %v33, 127
    %v35 = vld [vmem:[%s0] sm:$0xff]
    %v36 = vld [vmem:[%s0 + $0x8] sm:$0xff]
    %37 = vset.pattern.permute.xlu0 0
    %38 = vperm.xlu0 %37, %v35
    %v39 = vpop.permute.xlu0 %38
    %40 = vset.pattern.permute.xlu0 0
    %41 = vperm.xlu0 %40, %v36
    %v42 = vpop.permute.xlu0 %41
    %vm43 = vcmp.eq.s32.totalorder %v34, %v39
    %vm44 = vcmp.eq.s32.totalorder %v34, %v42
    %v45 = vsel %vm43, 1, 0
    %v46 = vsel %vm44, 1, 0
    %v47 = vcvt.s32.f32 %v45
    %v48 = vcvt.s32.f32 %v46
    %v49 = vld [vmem:[#allocation2] sm:$0xff]
    %v50 = vld [vmem:[#allocation2 + $0x8] sm:$0xff]
    %v51 = vld [vmem:[#allocation2 + $0x10] sm:$0xff]
    %v52 = vld [vmem:[#allocation2 + $0x18] sm:$0xff]
    %v53 = vld [vmem:[#allocation2 + $0x20] sm:$0xff]
    %v54 = vld [vmem:[#allocation2 + $0x28] sm:$0xff]
    %v55 = vld [vmem:[#allocation2 + $0x30] sm:$0xff]
    %v56 = vld [vmem:[#allocation2 + $0x38] sm:$0xff]
    %v57 = vld [vmem:[#allocation2 + $0x40] sm:$0xff]
    %v58 = vld [vmem:[#allocation2 + $0x48] sm:$0xff]
    %v59 = vld [vmem:[#allocation2 + $0x50] sm:$0xff]
    %v60 = vld [vmem:[#allocation2 + $0x58] sm:$0xff]
    %v61 = vld [vmem:[#allocation2 + $0x60] sm:$0xff]
    %v62 = vld [vmem:[#allocation2 + $0x68] sm:$0xff]
    %v63 = vld [vmem:[#allocation2 + $0x70] sm:$0xff]
    %v64 = vld [vmem:[#allocation2 + $0x78] sm:$0xff]
    %65 = vmatpush.msra.mxu0 %v64
    %66 = vmatpush.msra.mxu0 %v63
    %67 = vmatpush.msra.mxu0 %v62
    %68 = vmatpush.msra.mxu0 %v61
    %69 = vmatpush.msra.mxu0 %v60
    %70 = vmatpush.msra.mxu0 %v59
    %71 = vmatpush.msra.mxu0 %v58
    %72 = vmatpush.msra.mxu0 %v57
    %73 = vmatpush.msra.mxu0 %v56
    %74 = vmatpush.msra.mxu0 %v55
    %75 = vmatpush.msra.mxu0 %v54
    %76 = vmatpush.msra.mxu0 %v53
    %77 = vmatpush.msra.mxu0 %v52
    %78 = vmatpush.msra.mxu0 %v51
    %79 = vmatpush.msra.mxu0 %v50
    %80 = vmatpush.msra.mxu0 %v49
    %81 = vmatmul.f32.gmra.mxu0 %v47
    %v82 = vpop.f32.mrf.mxu0
    %v83 = vadd.f32 0.0, %v82
    %84 = vmatmul.f32.gmra.mxu0 %v48
    %v85 = vpop.f32.mrf.mxu0
    %v86 = vadd.f32 0.0, %v85
    %87 = vdwg.mxu0
    %88 = vst [vmem:[#allocation5] sm:$0xff] %v83
    %89 = vst [vmem:[#allocation5 + $0x8] sm:$0xff] %v86
    %90 = vmax.xlane.f32.xlu0 %v83
    %v91 = vpop.xlane.xlu0 %90
    %92 = vmax.xlane.f32.xlu0 %v86
    %v93 = vpop.xlane.xlu0 %92
    %v94 = vsub.f32 %v83, %v91
    %v95 = vsub.f32 %v86, %v93
    %v96 = vmul.f32 %v94, 1.442695
    %v97 = vpow.pop %v96
    %v98 = vmul.f32 %v95, 1.442695
    %v99 = vpow.pop %v98
    %100 = vadd.xlane.f32.xlu0 %v97
    %v101 = vpop.xlane.xlu0 %100
    %102 = vadd.xlane.f32.xlu0 %v99
    %v103 = vpop.xlane.xlu0 %102
    %v104 = vlog2.pop %v101
    %v105 = vmul.f32 %v104, 0.6931472
    %v106 = vlog2.pop %v103
    %v107 = vmul.f32 %v106, 0.6931472
    %v108 = vld [vmem:[%s1] sm:$0xff]
    %v109 = vld [vmem:[%s1 + $0x8] sm:$0xff]
    %110 = vset.pattern.permute.xlu0 0
    %111 = vperm.xlu0 %110, %v108
    %v112 = vpop.permute.xlu0 %111
    %113 = vset.pattern.permute.xlu0 0
    %114 = vperm.xlu0 %113, %v109
    %v115 = vpop.permute.xlu0 %114
    %vm116 = vcmp.eq.s32.totalorder %v34, %v112
    %vm117 = vcmp.eq.s32.totalorder %v34, %v115
    %v118 = vsel %vm116, %v94, 0.0
    %v119 = vsel %vm117, %v95, 0.0
    %120 = vadd.xlane.f32.xlu0 %v118
    %v121 = vpop.xlane.xlu0 %120
    %122 = vadd.xlane.f32.xlu0 %v119
    %v123 = vpop.xlane.xlu0 %122
    %v124 = vsub.f32 %v105, %v121
    %v125 = vsub.f32 %v107, %v123
    %vm126 = vcmask 7168
    %127 = vst.msk [vmem:[%s4] sm:$0xff] %vm126, %v124
    %128 = vst.msk [vmem:[%s4 + $0x8] sm:$0xff] %vm126, %v125
    // Predicated region
    $region18: #{tpu_custom_call.1} parent=1 // pred_check
      _
    $region19: #{tpu_custom_call.1} parent=1 // pred_check_branch
      %130 = sbr.rel (0) target = $region21
    $region20: #{tpu_custom_call.1} parent=1 // pred_region
      %132 = vsyncadd [#allocation4], 0
      %s133 = sshll.u32 [#allocation5], 4
      %s134 = int_to_ptr.vmem [resolvable:$true] %s133
      %s135 = sshll.u32 %s3, 4
      %s136 = int_to_ptr.hbm [resolvable:$true] %s135
      %141 = dma.vmem_to_hbm [thread:$0]  %s134, 256, %s136, [#allocation4], 128, 128, 8
    $region21: #{tpu_custom_call.1} parent=1 // pred_fallthru
      _
    // Predicated region
    $region22: #{tpu_custom_call.1} parent=1 // pred_check
      _
    $region23: #{tpu_custom_call.1} parent=1 // pred_check_branch
      %143 = sbr.rel (0) target = $region25
    $region24: #{tpu_custom_call.1} parent=1 // pred_region
      _
    $region25: #{tpu_custom_call.1} parent=1 // pred_fallthru
      _
    // Predicated region
    $region26: #{tpu_custom_call.1} parent=1 // pred_check
      _
    $region27: #{tpu_custom_call.1} parent=1 // pred_check_branch
      %145 = sbr.rel (0) target = $region29
    $region28: #{tpu_custom_call.1} parent=1 // pred_region
      %147 = dma.done [#allocation4], 256
    $region29: #{tpu_custom_call.1} parent=1 // pred_fallthru
      _
    // Predicated region
    $region30: #{tpu_custom_call.1} parent=1 // pred_check
      _
    $region31: #{tpu_custom_call.1} parent=1 // pred_check_branch
      %149 = sbr.rel (0) target = $region33
    $region32: #{tpu_custom_call.1} parent=1 // pred_region
      _
    $region33: #{tpu_custom_call.1} parent=1 // pred_fallthru
      _
    %150 = vsyncpa [#allocation3], 1
    %151 = vsyncpa [#allocation4], 1

</llo_original>
